<compile_context>
chip_gen: v7x
topology: tpu7x:2x2x1
jax: 0.10.0
libtpu: 0.0.40
codegen_flags: <defaults>
</compile_context>

<pallas_src>
import jax
import jax.numpy as jnp
from jax.experimental import pallas as pl
from jax.experimental.pallas import tpu as pltpu  # noqa: F401  (TPU backend)


def wfc_kernel(x_ref, w_w2v_ref, b_w2v_ref, w_heads_ref, b_heads_ref,
               strong_ref, weak_ref):
    # x_ref: (B*T, F) pre-framed audio, all batch elements folded together.
    B, T, C = strong_ref.shape

    x = x_ref[...]                                                # (BT, F)

    # --- w2v proxy: single MXU matmul over the whole folded batch ---
    feat = jnp.dot(x, w_w2v_ref[...],
                   preferred_element_type=jnp.float32) + b_w2v_ref[...]

    # --- self.activation = ReLU ; dropout is identity at inference ---
    h = jnp.maximum(feat, 0.0)                                    # (BT, D)

    # --- fused heads: dense & dense_softmax in one (D, 2C) matmul ---
    logits = jnp.dot(h, w_heads_ref[...],
                     preferred_element_type=jnp.float32) + b_heads_ref[...]
    strong_logits = logits[:, :C]                                 # (BT, C)
    sof_logits = logits[:, C:2 * C]                               # (BT, C)

    # strong = sigmoid(dense(h))
    strong = 1.0 / (1.0 + jnp.exp(-strong_logits))                # (BT, C)

    # sof = clamp(softmax(dense_softmax(h), dim=-1), 1e-7, 1)
    sof_max = jnp.max(sof_logits, axis=-1, keepdims=True)
    sof_exp = jnp.exp(sof_logits - sof_max)
    sof = sof_exp * pl.reciprocal(
        jnp.sum(sof_exp, axis=-1, keepdims=True), approx=True)
    sof = jnp.clip(sof, 1e-7, 1.0)                                # (BT, C)

    # un-fold the batch for the per-batch time reduction
    strong_b = strong.reshape(B, T, C)
    sof_b = sof.reshape(B, T, C)

    # weak = (strong * sof).sum(time) / sof.sum(time)
    weak = jnp.sum(strong_b * sof_b, axis=1) * pl.reciprocal(
        jnp.sum(sof_b, axis=1), approx=True)                      # (B, C)

    strong_ref[...] = strong_b                                    # (B, T, C)
    weak_ref[...] = weak                                          # (B, C)


def wfc_forward(frames, w_w2v, b_w2v, w_dense, b_dense, w_sof, b_sof):
    B, T, F = frames.shape
    C = w_dense.shape[1]

    # Fold batch; fuse the two head weights/biases into one matmul operand.
    x = frames.reshape(B * T, F)
    w_heads = jnp.concatenate([w_dense, w_sof], axis=1)           # (D, 2C)
    b_heads = jnp.concatenate([b_dense, b_sof], axis=1)           # (1, 2C)

    strong_btc, weak = pl.pallas_call(
        wfc_kernel,
        out_shape=(jax.ShapeDtypeStruct((B, T, C), jnp.float32),
                   jax.ShapeDtypeStruct((B, C), jnp.float32)),
    )(x, w_w2v, b_w2v, w_heads, b_heads)

    # strong.transpose(1, 2) done by XLA in the wrapper (layout plumbing, not
    # an in-kernel XLU transpose + narrow-lane masked stores).
    return jnp.transpose(strong_btc, (0, 2, 1)), weak


def wfc_reference(frames, w_w2v, b_w2v, w_dense, b_dense, w_sof, b_sof):
    feat = jnp.einsum("btf,fd->btd", frames, w_w2v) + b_w2v
    h = jnp.maximum(feat, 0.0)
    strong = jax.nn.sigmoid(jnp.einsum("btd,dc->btc", h, w_dense) + b_dense)
    sof = jax.nn.softmax(jnp.einsum("btd,dc->btc", h, w_sof) + b_sof, axis=-1)
    sof = jnp.clip(sof, 1e-7, 1.0)
    weak = jnp.sum(strong * sof, axis=1) / jnp.sum(sof, axis=1)
    return jnp.transpose(strong, (0, 2, 1)), weak


if __name__ == "__main__":
    # Small deterministic shapes consistent with the module:
    # n_RNN_cell = D = 128 (wav2vec feature dim feeding nn.Linear(128, nclass)),
    # nclass = 10, batch = 2, T = 32 frames of F = 64 raw samples each.
    B, T, F, D, C = 2, 32, 64, 128, 10

    key = jax.random.PRNGKey(0)
    k_x, k_w0, k_w1, k_w2 = jax.random.split(key, 4)

    # raw audio (B, L) framed into (B, T, F)
    x_raw = jax.random.normal(k_x, (B, T * F), dtype=jnp.float32)
    frames = x_raw.reshape(B, T, F)

    w_w2v = 0.05 * jax.random.normal(k_w0, (F, D), dtype=jnp.float32)
    b_w2v = jnp.zeros((1, D), dtype=jnp.float32)
    w_dense = 0.05 * jax.random.normal(k_w1, (D, C), dtype=jnp.float32)
    b_dense = 0.01 * jnp.ones((1, C), dtype=jnp.float32)
    w_sof = 0.05 * jax.random.normal(k_w2, (D, C), dtype=jnp.float32)
    b_sof = jnp.zeros((1, C), dtype=jnp.float32)

    strong_t, weak = wfc_forward(frames, w_w2v, b_w2v,
                                 w_dense, b_dense, w_sof, b_sof)
    jax.block_until_ready((strong_t, weak))

    ref_strong_t, ref_weak = wfc_reference(frames, w_w2v, b_w2v,
                                           w_dense, b_dense, w_sof, b_sof)
    assert strong_t.shape == (B, C, T) and weak.shape == (B, C)
    # strong path has no approximate ops -> tight tolerance.
    assert jnp.allclose(strong_t, ref_strong_t, atol=1e-5, rtol=1e-5)
    # weak goes through two approx EUP reciprocals -> slightly looser tolerance.
    assert jnp.allclose(weak, ref_weak, atol=2e-3, rtol=2e-3)

    print("KERNEL_OK")
</pallas_src>

<mosaic_0001>
module attributes {stable_mosaic.version = 11 : i64} {
  func.func @wfc_kernel(%arg0: memref<64x64xf32, #tpu.memory_space<vmem>>, %arg1: memref<64x128xf32, #tpu.memory_space<vmem>>, %arg2: memref<1x128xf32, #tpu.memory_space<vmem>>, %arg3: memref<128x20xf32, #tpu.memory_space<vmem>>, %arg4: memref<1x20xf32, #tpu.memory_space<vmem>>, %arg5: memref<2x32x10xf32, #tpu.memory_space<vmem>>, %arg6: memref<2x10xf32, #tpu.memory_space<vmem>>) attributes {dimension_semantics = [], scalar_prefetch = 0 : i64, scratch_operands = 0 : i64, tpu.core_type = #tpu.core_type<tc>} {
    %c0 = arith.constant 0 : index
    %c0_0 = arith.constant 0 : index
    %0 = vector.load %arg0[%c0, %c0_0] : memref<64x64xf32, #tpu.memory_space<vmem>>, vector<64x64xf32>
    %c0_1 = arith.constant 0 : index
    %c0_2 = arith.constant 0 : index
    %1 = vector.load %arg1[%c0_1, %c0_2] : memref<64x128xf32, #tpu.memory_space<vmem>>, vector<64x128xf32>
    %cst = arith.constant dense<0.000000e+00> : vector<64x128xf32>
    %2 = tpu.matmul %0, %1, %cst {dimension_numbers = #tpu.dot_dimension_numbers<[1], [0], [0], [1], [0, 0, 1, 1], [], []>} : vector<64x64xf32>, vector<64x128xf32>, vector<64x128xf32> -> vector<64x128xf32>
    %c0_3 = arith.constant 0 : index
    %c0_4 = arith.constant 0 : index
    %3 = vector.load %arg2[%c0_3, %c0_4] : memref<1x128xf32, #tpu.memory_space<vmem>>, vector<1x128xf32>
    %4 = vector.broadcast %3 : vector<1x128xf32> to vector<64x128xf32>
    %5 = arith.addf %2, %4 : vector<64x128xf32>
    %cst_5 = arith.constant 0.000000e+00 : f32
    %6 = vector.broadcast %cst_5 : f32 to vector<64x128xf32>
    %7 = arith.maximumf %5, %6 : vector<64x128xf32>
    %c0_6 = arith.constant 0 : index
    %c0_7 = arith.constant 0 : index
    %8 = vector.load %arg3[%c0_6, %c0_7] : memref<128x20xf32, #tpu.memory_space<vmem>>, vector<128x20xf32>
    %cst_8 = arith.constant dense<0.000000e+00> : vector<64x20xf32>
    %9 = tpu.matmul %7, %8, %cst_8 {dimension_numbers = #tpu.dot_dimension_numbers<[1], [0], [0], [1], [0, 0, 1, 1], [], []>} : vector<64x128xf32>, vector<128x20xf32>, vector<64x20xf32> -> vector<64x20xf32>
    %c0_9 = arith.constant 0 : index
    %c0_10 = arith.constant 0 : index
    %10 = vector.load %arg4[%c0_9, %c0_10] : memref<1x20xf32, #tpu.memory_space<vmem>>, vector<1x20xf32>
    %11 = vector.broadcast %10 : vector<1x20xf32> to vector<64x20xf32>
    %12 = arith.addf %9, %11 : vector<64x20xf32>
    %13 = vector.extract_strided_slice %12 {offsets = [0, 0], sizes = [64, 10], strides = [1, 1]} : vector<64x20xf32> to vector<64x10xf32>
    %14 = vector.extract_strided_slice %12 {offsets = [0, 10], sizes = [64, 10], strides = [1, 1]} : vector<64x20xf32> to vector<64x10xf32>
    %cst_11 = arith.constant 0.000000e+00 : f32
    %15 = vector.broadcast %cst_11 : f32 to vector<64x10xf32>
    %16 = arith.subf %15, %13 : vector<64x10xf32>
    %17 = math.exp %16 : vector<64x10xf32>
    %cst_12 = arith.constant 1.000000e+00 : f32
    %18 = vector.broadcast %cst_12 : f32 to vector<64x10xf32>
    %19 = arith.addf %18, %17 : vector<64x10xf32>
    %cst_13 = arith.constant 1.000000e+00 : f32
    %20 = vector.broadcast %cst_13 : f32 to vector<64x10xf32>
    %21 = arith.divf %20, %19 : vector<64x10xf32>
    %cst_14 = arith.constant dense<0xFF800000> : vector<64xf32>
    %22 = vector.multi_reduction <maximumf>, %14, %cst_14 [1] : vector<64x10xf32> to vector<64xf32>
    %23 = vector.shape_cast %22 : vector<64xf32> to vector<64x1xf32>
    %24 = vector.broadcast %23 : vector<64x1xf32> to vector<64x10xf32>
    %25 = arith.subf %14, %24 : vector<64x10xf32>
    %26 = math.exp %25 : vector<64x10xf32>
    %cst_15 = arith.constant dense<0.000000e+00> : vector<64xf32>
    %27 = vector.multi_reduction <add>, %26, %cst_15 [1] : vector<64x10xf32> to vector<64xf32>
    %28 = vector.shape_cast %27 : vector<64xf32> to vector<64x1xf32>
    %29 = tpu.reciprocal %28 {approx = true} : vector<64x1xf32> -> vector<64x1xf32>
    %30 = vector.broadcast %29 : vector<64x1xf32> to vector<64x10xf32>
    %31 = arith.mulf %26, %30 : vector<64x10xf32>
    %cst_16 = arith.constant 1.000000e-07 : f32
    %cst_17 = arith.constant 1.000000e+00 : f32
    %32 = vector.broadcast %cst_16 : f32 to vector<64x10xf32>
    %33 = arith.maximumf %32, %31 : vector<64x10xf32>
    %34 = vector.broadcast %cst_17 : f32 to vector<64x10xf32>
    %35 = arith.minimumf %34, %33 : vector<64x10xf32>
    %36 = vector.shape_cast %21 : vector<64x10xf32> to vector<2x32x10xf32>
    %37 = vector.shape_cast %35 : vector<64x10xf32> to vector<2x32x10xf32>
    %38 = arith.mulf %36, %37 : vector<2x32x10xf32>
    %cst_18 = arith.constant dense<0.000000e+00> : vector<2x10xf32>
    %39 = vector.multi_reduction <add>, %38, %cst_18 [1] : vector<2x32x10xf32> to vector<2x10xf32>
    %cst_19 = arith.constant dense<0.000000e+00> : vector<2x10xf32>
    %40 = vector.multi_reduction <add>, %37, %cst_19 [1] : vector<2x32x10xf32> to vector<2x10xf32>
    %41 = tpu.reciprocal %40 {approx = true} : vector<2x10xf32> -> vector<2x10xf32>
    %42 = arith.mulf %39, %41 : vector<2x10xf32>
    %c0_20 = arith.constant 0 : index
    %c0_21 = arith.constant 0 : index
    %c0_22 = arith.constant 0 : index
    %43 = vector.load %arg5[%c0_20, %c0_21, %c0_22] : memref<2x32x10xf32, #tpu.memory_space<vmem>>, vector<2x32x10xf32>
    tpu.vector_store %arg5[%c0_20, %c0_21, %c0_22], %36 {strides = array<i32>} : memref<2x32x10xf32, #tpu.memory_space<vmem>>, vector<2x32x10xf32>,
    %c0_23 = arith.constant 0 : index
    %c0_24 = arith.constant 0 : index
    %44 = vector.load %arg6[%c0_23, %c0_24] : memref<2x10xf32, #tpu.memory_space<vmem>>, vector<2x10xf32>
    tpu.vector_store %arg6[%c0_23, %c0_24], %42 {strides = array<i32>} : memref<2x10xf32, #tpu.memory_space<vmem>>, vector<2x10xf32>,
    return
  }
}

</mosaic_0001>

<llo_original>
// kernel: tpu_custom_call.1
$region0: #{tpu_custom_call.1}
  #allocation0 [shape = 'u32[]', space=smem, size = 0x4, offset = 0x4, fixed_abs, tag = 'smem constant byte address 0x4 - core index']
  #allocation1 [shape = 'u32[144,128]{1,0:T(1,128)}', space=vmem, size = 0x12000, scoped, tag = 'internal scratch']
  %s0 = inlined_call_operand.vmem [shape: f32[64,64], index: 0, kind: input, shape index: {}]
  %s1 = inlined_call_operand.vmem [shape: f32[64,128], index: 1, kind: input, shape index: {}]
  %s2 = inlined_call_operand.vmem [shape: f32[1,128], index: 2, kind: input, shape index: {}]
  %s3 = inlined_call_operand.vmem [shape: f32[128,20], index: 3, kind: input, shape index: {}]
  %s4 = inlined_call_operand.vmem [shape: f32[1,20], index: 4, kind: input, shape index: {}]
  %s5 = inlined_call_operand.vmem [shape: f32[2,32,10], index: 5, kind: output, shape index: {0}]
  %s6 = inlined_call_operand.hbm [shape: f32[2,10], index: 6, kind: output, shape index: {1}]
  %7 = xla_tuple %s5, %s6
  %s8 = sld [smem:[#allocation0]]
  $region38: #{tpu_custom_call.1} parent=0
    _
  %s10 = ssub.s32 1, %s8
  %s11 = scalar_select 0, %s10, %s8
  $region1: #{tpu_custom_call.1} parent=0
    #allocation2 [shape = 'u8[1024]{0}', space=vmem, size = 0x400, scoped, tag = 'output window, operand 1, single buffered']
    #allocation3 [shape = 's32[1]{0}', space=sflag, size = 0x4, scoped, tag = 'scoped memory for tpu_custom_call.1']
    %12 = vsyncpa [#allocation3], 0
    // Predicated region
    $region2: #{tpu_custom_call.1} parent=1 // pred_check
      _
    $region3: #{tpu_custom_call.1} parent=1 // pred_check_branch
      %14 = sbr.rel (0) target = $region5
    $region4: #{tpu_custom_call.1} parent=1 // pred_region
      _
    $region5: #{tpu_custom_call.1} parent=1 // pred_fallthru
      _
    // Predicated region
    $region6: #{tpu_custom_call.1} parent=1 // pred_check
      _
    $region7: #{tpu_custom_call.1} parent=1 // pred_check_branch
      %16 = sbr.rel (0) target = $region9
    $region8: #{tpu_custom_call.1} parent=1 // pred_region
      _
    $region9: #{tpu_custom_call.1} parent=1 // pred_fallthru
      _
    // Predicated region
    $region10: #{tpu_custom_call.1} parent=1 // pred_check
      _
    $region11: #{tpu_custom_call.1} parent=1 // pred_check_branch
      %18 = sbr.rel (0) target = $region13
    $region12: #{tpu_custom_call.1} parent=1 // pred_region
      _
    $region13: #{tpu_custom_call.1} parent=1 // pred_fallthru
      _
    // Predicated region
    $region14: #{tpu_custom_call.1} parent=1 // pred_check
      _
    $region15: #{tpu_custom_call.1} parent=1 // pred_check_branch
      %20 = sbr.rel (0) target = $region17
    $region16: #{tpu_custom_call.1} parent=1 // pred_region
      _
    $region17: #{tpu_custom_call.1} parent=1 // pred_fallthru
      _
    // Predicated region
    $region18: #{tpu_custom_call.1} parent=1 // pred_check
      _
    $region19: #{tpu_custom_call.1} parent=1 // pred_check_branch
      %22 = sbr.rel (0) target = $region21
    $region20: #{tpu_custom_call.1} parent=1 // pred_region
      _
    $region21: #{tpu_custom_call.1} parent=1 // pred_fallthru
      _
    %v23 = vld [vmem:[%s0] sm:$0xff]
    %v24 = vld [vmem:[%s0 + $0x8] sm:$0xff]
    %v25 = vld [vmem:[%s0 + $0x10] sm:$0xff]
    %v26 = vld [vmem:[%s0 + $0x18] sm:$0xff]
    %v27 = vld [vmem:[%s0 + $0x20] sm:$0xff]
    %v28 = vld [vmem:[%s0 + $0x28] sm:$0xff]
    %v29 = vld [vmem:[%s0 + $0x30] sm:$0xff]
    %v30 = vld [vmem:[%s0 + $0x38] sm:$0xff]
    %v31 = vld [vmem:[%s1] sm:$0xff]
    %v32 = vld [vmem:[%s1 + $0x8] sm:$0xff]
    %v33 = vld [vmem:[%s1 + $0x10] sm:$0xff]
    %v34 = vld [vmem:[%s1 + $0x18] sm:$0xff]
    %v35 = vld [vmem:[%s1 + $0x20] sm:$0xff]
    %v36 = vld [vmem:[%s1 + $0x28] sm:$0xff]
    %v37 = vld [vmem:[%s1 + $0x30] sm:$0xff]
    %v38 = vld [vmem:[%s1 + $0x38] sm:$0xff]
    %v39 = vld [vmem:[%s2] sm:$0x1]
    %v41 = vlaneseq
    %v42 = vshrl.u32 %v41, 7
    %v43 = vsub.s32 0, %v42
    %v44 = vrot.slane %v39, %v43
    %vm46 = vcmask 523264
    %v48 = vsel %vm46, %v23, 0
    %v51 = vsel %vm46, %v24, 0
    %v54 = vsel %vm46, %v25, 0
    %v57 = vsel %vm46, %v26, 0
    %v60 = vsel %vm46, %v27, 0
    %v63 = vsel %vm46, %v28, 0
    %v66 = vsel %vm46, %v29, 0
    %v69 = vsel %vm46, %v30, 0
    %71 = vmatprep.subr.mxu0 0.0
    %72 = vmatpush1.msra.mxu0 %v31
    %73 = vmatprep.subr.mxu0 0.0
    %74 = vmatpush1.msra.mxu0 %v32
    %75 = vmatprep.subr.mxu0 0.0
    %76 = vmatpush1.msra.mxu0 %v33
    %77 = vmatprep.subr.mxu0 0.0
    %78 = vmatpush1.msra.mxu0 %v34
    %79 = vmatprep.subr.mxu0 0.0
    %80 = vmatpush1.msra.mxu0 %v35
    %81 = vmatprep.subr.mxu0 0.0
    %82 = vmatpush1.msra.mxu0 %v36
    %83 = vmatprep.subr.mxu0 0.0
    %84 = vmatpush1.msra.mxu0 %v37
    %85 = vmatprep.subr.mxu0 0.0
    %86 = vmatpush1.msra.mxu0 %v38
    %87 = vmatprep.subr.mxu0 0.0
    %88 = vmatpush1.msra.mxu0 0.0
    %89 = vmatprep.subr.mxu0 0.0
    %90 = vmatpush1.msra.mxu0 0.0
    %91 = vmatprep.subr.mxu0 0.0
    %92 = vmatpush1.msra.mxu0 0.0
    %93 = vmatprep.subr.mxu0 0.0
    %94 = vmatpush1.msra.mxu0 0.0
    %95 = vmatprep.subr.mxu0 0.0
    %96 = vmatpush1.msra.mxu0 0.0
    %97 = vmatprep.subr.mxu0 0.0
    %98 = vmatpush1.msra.mxu0 0.0
    %99 = vmatprep.subr.mxu0 0.0
    %100 = vmatpush1.msra.mxu0 0.0
    %101 = vmatprep.subr.mxu0 0.0
    %102 = vmatpush1.msra.mxu0 0.0
    %103 = vmatprep.subr.mxu0 0.0
    %104 = vmatpush1.msra.mxu0 0.0
    %105 = vmatprep.subr.mxu0 0.0
    %106 = vmatpush1.msra.mxu0 0.0
    %107 = vmatprep.subr.mxu0 0.0
    %108 = vmatpush1.msra.mxu0 0.0
    %109 = vmatprep.subr.mxu0 0.0
    %110 = vmatpush1.msra.mxu0 0.0
    %111 = vmatprep.subr.mxu0 0.0
    %112 = vmatpush1.msra.mxu0 0.0
    %113 = vmatprep.subr.mxu0 0.0
    %114 = vmatpush1.msra.mxu0 0.0
    %115 = vmatprep.subr.mxu0 0.0
    %116 = vmatpush1.msra.mxu0 0.0
    %117 = vmatprep.subr.mxu0 0.0
    %118 = vmatpush1.msra.mxu0 0.0
    %119 = vmatprep.subr.mxu0 0.0
    %120 = vmatpush1.msra.mxu0 0.0
    %121 = vmatprep.subr.mxu0 0.0
    %122 = vmatpush1.msra.mxu0 0.0
    %123 = vmatprep.subr.mxu0 0.0
    %124 = vmatpush1.msra.mxu0 0.0
    %125 = vmatprep.subr.mxu0 0.0
    %126 = vmatpush1.msra.mxu0 0.0
    %127 = vmatprep.subr.mxu0 0.0
    %128 = vmatpush1.msra.mxu0 0.0
    %129 = vmatprep.subr.mxu0 0.0
    %130 = vmatpush1.msra.mxu0 0.0
    %131 = vmatprep.subr.mxu0 0.0
    %132 = vmatpush1.msra.mxu0 0.0
    %133 = vmatprep.subr.mxu0 0.0
    %134 = vmatpush1.msra.mxu0 0.0
    %135 = vmatprep.mubr.f32.mxu0 0.0
    %136 = vmatmul.mubr.f32.gmra.mrb[0].mxu0 %v48
    %v137 = vpop.f32.mrb[0].mxu0
    %v138 = vadd.f32 %v44, %v137
    %v139 = vpop.f32.mrb[0].mxu0
    %140 = vmatprep.mubr.f32.mxu0 0.0
    %141 = vmatmul.mubr.f32.gmra.mrb[0].mxu0 %v51
    %v142 = vpop.f32.mrb[0].mxu0
    %v143 = vadd.f32 %v44, %v142
    %v144 = vpop.f32.mrb[0].mxu0
    %145 = vmatprep.mubr.f32.mxu0 0.0
    %146 = vmatmul.mubr.f32.gmra.mrb[0].mxu0 %v54
    %v147 = vpop.f32.mrb[0].mxu0
    %v148 = vadd.f32 %v44, %v147
    %v149 = vpop.f32.mrb[0].mxu0
    %150 = vmatprep.mubr.f32.mxu0 0.0
    %151 = vmatmul.mubr.f32.gmra.mrb[0].mxu0 %v57
    %v152 = vpop.f32.mrb[0].mxu0
    %v153 = vadd.f32 %v44, %v152
    %v154 = vpop.f32.mrb[0].mxu0
    %155 = vmatprep.mubr.f32.mxu0 0.0
    %156 = vmatmul.mubr.f32.gmra.mrb[0].mxu0 %v60
    %v157 = vpop.f32.mrb[0].mxu0
    %v158 = vadd.f32 %v44, %v157
    %v159 = vpop.f32.mrb[0].mxu0
    %160 = vmatprep.mubr.f32.mxu0 0.0
    %161 = vmatmul.mubr.f32.gmra.mrb[0].mxu0 %v63
    %v162 = vpop.f32.mrb[0].mxu0
    %v163 = vadd.f32 %v44, %v162
    %v164 = vpop.f32.mrb[0].mxu0
    %165 = vmatprep.mubr.f32.mxu0 0.0
    %166 = vmatmul.mubr.f32.gmra.mrb[0].mxu0 %v66
    %v167 = vpop.f32.mrb[0].mxu0
    %v168 = vadd.f32 %v44, %v167
    %v169 = vpop.f32.mrb[0].mxu0
    %170 = vmatprep.mubr.f32.mxu0 0.0
    %171 = vmatmul.mubr.f32.gmra.mrb[0].mxu0 %v69
    %v172 = vpop.f32.mrb[0].mxu0
    %v173 = vadd.f32 %v44, %v172
    %v174 = vpop.f32.mrb[0].mxu0
    %175 = vdwg.mxu0
    %v176 = vmax.f32 %v138, 0.0
    %v177 = vmax.f32 %v143, 0.0
    %v178 = vmax.f32 %v148, 0.0
    %v179 = vmax.f32 %v153, 0.0
    %v180 = vmax.f32 %v158, 0.0
    %v181 = vmax.f32 %v163, 0.0
    %v182 = vmax.f32 %v168, 0.0
    %v183 = vmax.f32 %v173, 0.0
    %v184 = vld [vmem:[%s3] sm:$0xff]
    %v185 = vld [vmem:[%s3 + $0x8] sm:$0xff]
    %v186 = vld [vmem:[%s3 + $0x10] sm:$0xff]
    %v187 = vld [vmem:[%s3 + $0x18] sm:$0xff]
    %v188 = vld [vmem:[%s3 + $0x20] sm:$0xff]
    %v189 = vld [vmem:[%s3 + $0x28] sm:$0xff]
    %v190 = vld [vmem:[%s3 + $0x30] sm:$0xff]
    %v191 = vld [vmem:[%s3 + $0x38] sm:$0xff]
    %v192 = vld [vmem:[%s3 + $0x40] sm:$0xff]
    %v193 = vld [vmem:[%s3 + $0x48] sm:$0xff]
    %v194 = vld [vmem:[%s3 + $0x50] sm:$0xff]
    %v195 = vld [vmem:[%s3 + $0x58] sm:$0xff]
    %v196 = vld [vmem:[%s3 + $0x60] sm:$0xff]
    %v197 = vld [vmem:[%s3 + $0x68] sm:$0xff]
    %v198 = vld [vmem:[%s3 + $0x70] sm:$0xff]
    %v199 = vld [vmem:[%s3 + $0x78] sm:$0xff]
    %v200 = vld [vmem:[%s4] sm:$0x1]
    %v202 = vlaneseq
    %v203 = vshrl.u32 %v202, 7
    %v204 = vsub.s32 0, %v203
    %v205 = vrot.slane %v200, %v204
    %207 = vmatprep.subr.mxu0 0.0
    %208 = vmatpush1.msra.mxu0 %v184
    %209 = vmatprep.subr.mxu0 0.0
    %210 = vmatpush1.msra.mxu0 %v185
    %211 = vmatprep.subr.mxu0 0.0
    %212 = vmatpush1.msra.mxu0 %v186
    %213 = vmatprep.subr.mxu0 0.0
    %214 = vmatpush1.msra.mxu0 %v187
    %215 = vmatprep.subr.mxu0 0.0
    %216 = vmatpush1.msra.mxu0 %v188
    %217 = vmatprep.subr.mxu0 0.0
    %218 = vmatpush1.msra.mxu0 %v189
    %219 = vmatprep.subr.mxu0 0.0
    %220 = vmatpush1.msra.mxu0 %v190
    %221 = vmatprep.subr.mxu0 0.0
    %222 = vmatpush1.msra.mxu0 %v191
    %223 = vmatprep.subr.mxu0 0.0
    %224 = vmatpush1.msra.mxu0 %v192
    %225 = vmatprep.subr.mxu0 0.0
    %226 = vmatpush1.msra.mxu0 %v193
    %227 = vmatprep.subr.mxu0 0.0
    %228 = vmatpush1.msra.mxu0 %v194
    %229 = vmatprep.subr.mxu0 0.0
    %230 = vmatpush1.msra.mxu0 %v195
    %231 = vmatprep.subr.mxu0 0.0
    %232 = vmatpush1.msra.mxu0 %v196
    %233 = vmatprep.subr.mxu0 0.0
    %234 = vmatpush1.msra.mxu0 %v197
    %235 = vmatprep.subr.mxu0 0.0
    %236 = vmatpush1.msra.mxu0 %v198
    %237 = vmatprep.subr.mxu0 0.0
    %238 = vmatpush1.msra.mxu0 %v199
    %239 = vmatprep.subr.mxu0 0.0
    %240 = vmatpush1.msra.mxu0 0.0
    %241 = vmatprep.subr.mxu0 0.0
    %242 = vmatpush1.msra.mxu0 0.0
    %243 = vmatprep.subr.mxu0 0.0
    %244 = vmatpush1.msra.mxu0 0.0
    %245 = vmatprep.subr.mxu0 0.0
    %246 = vmatpush1.msra.mxu0 0.0
    %247 = vmatprep.subr.mxu0 0.0
    %248 = vmatpush1.msra.mxu0 0.0
    %249 = vmatprep.subr.mxu0 0.0
    %250 = vmatpush1.msra.mxu0 0.0
    %251 = vmatprep.subr.mxu0 0.0
    %252 = vmatpush1.msra.mxu0 0.0
    %253 = vmatprep.subr.mxu0 0.0
    %254 = vmatpush1.msra.mxu0 0.0
    %255 = vmatprep.subr.mxu0 0.0
    %256 = vmatpush1.msra.mxu0 0.0
    %257 = vmatprep.subr.mxu0 0.0
    %258 = vmatpush1.msra.mxu0 0.0
    %259 = vmatprep.subr.mxu0 0.0
    %260 = vmatpush1.msra.mxu0 0.0
    %261 = vmatprep.subr.mxu0 0.0
    %262 = vmatpush1.msra.mxu0 0.0
    %263 = vmatprep.subr.mxu0 0.0
    %264 = vmatpush1.msra.mxu0 0.0
    %265 = vmatprep.subr.mxu0 0.0
    %266 = vmatpush1.msra.mxu0 0.0
    %267 = vmatprep.subr.mxu0 0.0
    %268 = vmatpush1.msra.mxu0 0.0
    %269 = vmatprep.subr.mxu0 0.0
    %270 = vmatpush1.msra.mxu0 0.0
    %271 = vmatprep.mubr.f32.mxu0 0.0
    %272 = vmatmul.mubr.f32.gmra.mrb[0].mxu0 %v176
    %v273 = vpop.f32.mrb[0].mxu0
    %v274 = vadd.f32 %v205, %v273
    %v275 = vpop.f32.mrb[0].mxu0
    %276 = vmatprep.mubr.f32.mxu0 0.0
    %277 = vmatmul.mubr.f32.gmra.mrb[0].mxu0 %v177
    %v278 = vpop.f32.mrb[0].mxu0
    %v279 = vadd.f32 %v205, %v278
    %v280 = vpop.f32.mrb[0].mxu0
    %281 = vmatprep.mubr.f32.mxu0 0.0
    %282 = vmatmul.mubr.f32.gmra.mrb[0].mxu0 %v178
    %v283 = vpop.f32.mrb[0].mxu0
    %v284 = vadd.f32 %v205, %v283
    %v285 = vpop.f32.mrb[0].mxu0
    %286 = vmatprep.mubr.f32.mxu0 0.0
    %287 = vmatmul.mubr.f32.gmra.mrb[0].mxu0 %v179
    %v288 = vpop.f32.mrb[0].mxu0
    %v289 = vadd.f32 %v205, %v288
    %v290 = vpop.f32.mrb[0].mxu0
    %291 = vmatprep.mubr.f32.mxu0 0.0
    %292 = vmatmul.mubr.f32.gmra.mrb[0].mxu0 %v180
    %v293 = vpop.f32.mrb[0].mxu0
    %v294 = vadd.f32 %v205, %v293
    %v295 = vpop.f32.mrb[0].mxu0
    %296 = vmatprep.mubr.f32.mxu0 0.0
    %297 = vmatmul.mubr.f32.gmra.mrb[0].mxu0 %v181
    %v298 = vpop.f32.mrb[0].mxu0
    %v299 = vadd.f32 %v205, %v298
    %v300 = vpop.f32.mrb[0].mxu0
    %301 = vmatprep.mubr.f32.mxu0 0.0
    %302 = vmatmul.mubr.f32.gmra.mrb[0].mxu0 %v182
    %v303 = vpop.f32.mrb[0].mxu0
    %v304 = vadd.f32 %v205, %v303
    %v305 = vpop.f32.mrb[0].mxu0
    %306 = vmatprep.mubr.f32.mxu0 0.0
    %307 = vmatmul.mubr.f32.gmra.mrb[0].mxu0 %v183
    %v308 = vpop.f32.mrb[0].mxu0
    %v309 = vadd.f32 %v205, %v308
    %v310 = vpop.f32.mrb[0].mxu0
    %311 = vdwg.mxu0
    %v312 = vsub.f32 0.0, %v274
    %v313 = vsub.f32 0.0, %v279
    %v314 = vsub.f32 0.0, %v284
    %v315 = vsub.f32 0.0, %v289
    %v316 = vsub.f32 0.0, %v294
    %v317 = vsub.f32 0.0, %v299
    %v318 = vsub.f32 0.0, %v304
    %v319 = vsub.f32 0.0, %v309
    %v320 = vmul.f32 %v312, 1.442695
    %v321 = vpow.pop %v320
    %v322 = vmul.f32 %v313, 1.442695
    %v323 = vpow.pop %v322
    %v324 = vmul.f32 %v314, 1.442695
    %v325 = vpow.pop %v324
    %v326 = vmul.f32 %v315, 1.442695
    %v327 = vpow.pop %v326
    %v328 = vmul.f32 %v316, 1.442695
    %v329 = vpow.pop %v328
    %v330 = vmul.f32 %v317, 1.442695
    %v331 = vpow.pop %v330
    %v332 = vmul.f32 %v318, 1.442695
    %v333 = vpow.pop %v332
    %v334 = vmul.f32 %v319, 1.442695
    %v335 = vpow.pop %v334
    %v336 = vadd.f32 %v321, 1.0
    %v337 = vadd.f32 %v323, 1.0
    %v338 = vadd.f32 %v325, 1.0
    %v339 = vadd.f32 %v327, 1.0
    %v340 = vadd.f32 %v329, 1.0
    %v341 = vadd.f32 %v331, 1.0
    %v342 = vadd.f32 %v333, 1.0
    %v343 = vadd.f32 %v335, 1.0
    %v344 = vrcp.pop %v336
    %v345 = vmul.f32 1.0, %v344
    %v346 = vrcp.pop %v337
    %v347 = vmul.f32 1.0, %v346
    %v348 = vrcp.pop %v338
    %v349 = vmul.f32 1.0, %v348
    %v350 = vrcp.pop %v339
    %v351 = vmul.f32 1.0, %v350
    %v352 = vrcp.pop %v340
    %v353 = vmul.f32 1.0, %v352
    %v354 = vrcp.pop %v341
    %v355 = vmul.f32 1.0, %v354
    %v356 = vrcp.pop %v342
    %v357 = vmul.f32 1.0, %v356
    %v358 = vrcp.pop %v343
    %v359 = vmul.f32 1.0, %v358
    %vm360 = vcmask 162896
    %v361 = vsel %vm360, %v274, -inf
    %362 = vmax.xlane.f32.xlu0 %v361
    %v363 = vpop.xlane.xlu0 %362
    %v364 = vsel %vm360, %v279, -inf
    %365 = vmax.xlane.f32.xlu0 %v364
    %v366 = vpop.xlane.xlu0 %365
    %v367 = vsel %vm360, %v284, -inf
    %368 = vmax.xlane.f32.xlu0 %v367
    %v369 = vpop.xlane.xlu0 %368
    %v370 = vsel %vm360, %v289, -inf
    %371 = vmax.xlane.f32.xlu0 %v370
    %v372 = vpop.xlane.xlu0 %371
    %v373 = vsel %vm360, %v294, -inf
    %374 = vmax.xlane.f32.xlu0 %v373
    %v375 = vpop.xlane.xlu0 %374
    %v376 = vsel %vm360, %v299, -inf
    %377 = vmax.xlane.f32.xlu0 %v376
    %v378 = vpop.xlane.xlu0 %377
    %v379 = vsel %vm360, %v304, -inf
    %380 = vmax.xlane.f32.xlu0 %v379
    %v381 = vpop.xlane.xlu0 %380
    %v382 = vsel %vm360, %v309, -inf
    %383 = vmax.xlane.f32.xlu0 %v382
    %v384 = vpop.xlane.xlu0 %383
    %v385 = vsub.f32 %v274, %v363
    %v386 = vsub.f32 %v279, %v366
    %v387 = vsub.f32 %v284, %v369
    %v388 = vsub.f32 %v289, %v372
    %v389 = vsub.f32 %v294, %v375
    %v390 = vsub.f32 %v299, %v378
    %v391 = vsub.f32 %v304, %v381
    %v392 = vsub.f32 %v309, %v384
    %v393 = vmul.f32 %v385, 1.442695
    %v394 = vpow.pop %v393
    %v395 = vmul.f32 %v386, 1.442695
    %v396 = vpow.pop %v395
    %v397 = vmul.f32 %v387, 1.442695
    %v398 = vpow.pop %v397
    %v399 = vmul.f32 %v388, 1.442695
    %v400 = vpow.pop %v399
    %v401 = vmul.f32 %v389, 1.442695
    %v402 = vpow.pop %v401
    %v403 = vmul.f32 %v390, 1.442695
    %v404 = vpow.pop %v403
    %v405 = vmul.f32 %v391, 1.442695
    %v406 = vpow.pop %v405
    %v407 = vmul.f32 %v392, 1.442695
    %v408 = vpow.pop %v407
    %417 = vrot.lane.b32.xlu0 %v394, 118
    %v418 = vpop.permute.xlu0 %417
    %419 = vrot.lane.b32.xlu0 %v396, 118
    %v420 = vpop.permute.xlu0 %419
    %421 = vrot.lane.b32.xlu0 %v398, 118
    %v422 = vpop.permute.xlu0 %421
    %423 = vrot.lane.b32.xlu0 %v400, 118
    %v424 = vpop.permute.xlu0 %423
    %425 = vrot.lane.b32.xlu0 %v402, 118
    %v426 = vpop.permute.xlu0 %425
    %427 = vrot.lane.b32.xlu0 %v404, 118
    %v428 = vpop.permute.xlu0 %427
    %429 = vrot.lane.b32.xlu0 %v406, 118
    %v430 = vpop.permute.xlu0 %429
    %431 = vrot.lane.b32.xlu0 %v408, 118
    %v432 = vpop.permute.xlu0 %431
    %vm441 = vcmask 80896
    %v442 = vsel %vm441, %v418, 0.0
    %443 = vadd.xlane.f32.xlu0 %v442
    %v444 = vpop.xlane.xlu0 %443
    %v445 = vsel %vm441, %v420, 0.0
    %446 = vadd.xlane.f32.xlu0 %v445
    %v447 = vpop.xlane.xlu0 %446
    %v448 = vsel %vm441, %v422, 0.0
    %449 = vadd.xlane.f32.xlu0 %v448
    %v450 = vpop.xlane.xlu0 %449
    %v451 = vsel %vm441, %v424, 0.0
    %452 = vadd.xlane.f32.xlu0 %v451
    %v453 = vpop.xlane.xlu0 %452
    %v454 = vsel %vm441, %v426, 0.0
    %455 = vadd.xlane.f32.xlu0 %v454
    %v456 = vpop.xlane.xlu0 %455
    %v457 = vsel %vm441, %v428, 0.0
    %458 = vadd.xlane.f32.xlu0 %v457
    %v459 = vpop.xlane.xlu0 %458
    %v460 = vsel %vm441, %v430, 0.0
    %461 = vadd.xlane.f32.xlu0 %v460
    %v462 = vpop.xlane.xlu0 %461
    %v463 = vsel %vm441, %v432, 0.0
    %464 = vadd.xlane.f32.xlu0 %v463
    %v465 = vpop.xlane.xlu0 %464
    %v466 = vrcp.pop %v444
    %v467 = vrcp.pop %v447
    %v468 = vrcp.pop %v450
    %v469 = vrcp.pop %v453
    %v470 = vrcp.pop %v456
    %v471 = vrcp.pop %v459
    %v472 = vrcp.pop %v462
    %v473 = vrcp.pop %v465
    %v474 = vmul.f32 %v394, %v466
    %v475 = vmul.f32 %v396, %v467
    %v476 = vmul.f32 %v398, %v468
    %v477 = vmul.f32 %v400, %v469
    %v478 = vmul.f32 %v402, %v470
    %v479 = vmul.f32 %v404, %v471
    %v480 = vmul.f32 %v406, %v472
    %v481 = vmul.f32 %v408, %v473
    %v482 = vmax.f32 %v474, 1e-07
    %v483 = vmax.f32 %v475, 1e-07
    %v484 = vmax.f32 %v476, 1e-07
    %v485 = vmax.f32 %v477, 1e-07
    %v486 = vmax.f32 %v478, 1e-07
    %v487 = vmax.f32 %v479, 1e-07
    %v488 = vmax.f32 %v480, 1e-07
    %v489 = vmax.f32 %v481, 1e-07
    %v490 = vmin.f32 %v482, 1.0
    %v491 = vmin.f32 %v483, 1.0
    %v492 = vmin.f32 %v484, 1.0
    %v493 = vmin.f32 %v485, 1.0
    %v494 = vmin.f32 %v486, 1.0
    %v495 = vmin.f32 %v487, 1.0
    %v496 = vmin.f32 %v488, 1.0
    %v497 = vmin.f32 %v489, 1.0
    %506 = vrot.lane.b32.xlu0 %v490, 118
    %v507 = vpop.permute.xlu0 %506
    %508 = vrot.lane.b32.xlu0 %v491, 118
    %v509 = vpop.permute.xlu0 %508
    %510 = vrot.lane.b32.xlu0 %v492, 118
    %v511 = vpop.permute.xlu0 %510
    %512 = vrot.lane.b32.xlu0 %v493, 118
    %v513 = vpop.permute.xlu0 %512
    %514 = vrot.lane.b32.xlu0 %v494, 118
    %v515 = vpop.permute.xlu0 %514
    %516 = vrot.lane.b32.xlu0 %v495, 118
    %v517 = vpop.permute.xlu0 %516
    %518 = vrot.lane.b32.xlu0 %v496, 118
    %v519 = vpop.permute.xlu0 %518
    %520 = vrot.lane.b32.xlu0 %v497, 118
    %v521 = vpop.permute.xlu0 %520
    %v530 = vmul.f32 %v345, %v507
    %v531 = vmul.f32 %v347, %v509
    %v532 = vmul.f32 %v349, %v511
    %v533 = vmul.f32 %v351, %v513
    %v534 = vmul.f32 %v353, %v515
    %v535 = vmul.f32 %v355, %v517
    %v536 = vmul.f32 %v357, %v519
    %v537 = vmul.f32 %v359, %v521
    %v538 = vsel %vm441, %v530, 0.0
    %v539 = vsel %vm441, %v531, 0.0
    %v540 = vadd.f32 %v538, %v539
    %v541 = vsel %vm441, %v532, 0.0
    %v542 = vadd.f32 %v540, %v541
    %v543 = vsel %vm441, %v533, 0.0
    %v544 = vadd.f32 %v542, %v543
    %v545 = vrot.slane %v544, 4
    %v546 = vadd.f32 %v544, %v545
    %v547 = vrot.slane %v546, 2
    %v548 = vadd.f32 %v546, %v547
    %v549 = vrot.slane %v548, 1
    %v550 = vadd.f32 %v548, %v549
    %v551 = vsel %vm441, %v534, 0.0
    %v552 = vsel %vm441, %v535, 0.0
    %v553 = vadd.f32 %v551, %v552
    %v554 = vsel %vm441, %v536, 0.0
    %v555 = vadd.f32 %v553, %v554
    %v556 = vsel %vm441, %v537, 0.0
    %v557 = vadd.f32 %v555, %v556
    %v558 = vrot.slane %v557, 4
    %v559 = vadd.f32 %v557, %v558
    %v560 = vrot.slane %v559, 2
    %v561 = vadd.f32 %v559, %v560
    %v562 = vrot.slane %v561, 1
    %v563 = vadd.f32 %v561, %v562
    %v564 = vsel %vm360, %v490, 0.0
    %v565 = vsel %vm360, %v491, 0.0
    %v566 = vadd.f32 %v564, %v565
    %v567 = vsel %vm360, %v492, 0.0
    %v568 = vadd.f32 %v566, %v567
    %v569 = vsel %vm360, %v493, 0.0
    %v570 = vadd.f32 %v568, %v569
    %v571 = vrot.slane %v570, 4
    %v572 = vadd.f32 %v570, %v571
    %v573 = vrot.slane %v572, 2
    %v574 = vadd.f32 %v572, %v573
    %v575 = vrot.slane %v574, 1
    %v576 = vadd.f32 %v574, %v575
    %v577 = vsel %vm360, %v494, 0.0
    %v578 = vsel %vm360, %v495, 0.0
    %v579 = vadd.f32 %v577, %v578
    %v580 = vsel %vm360, %v496, 0.0
    %v581 = vadd.f32 %v579, %v580
    %v582 = vsel %vm360, %v497, 0.0
    %v583 = vadd.f32 %v581, %v582
    %v584 = vrot.slane %v583, 4
    %v585 = vadd.f32 %v583, %v584
    %v586 = vrot.slane %v585, 2
    %v587 = vadd.f32 %v585, %v586
    %v588 = vrot.slane %v587, 1
    %v589 = vadd.f32 %v587, %v588
    %v590 = vrcp.pop %v576
    %v591 = vrcp.pop %v589
    %594 = vrot.lane.b32.xlu0 %v590, 118
    %v595 = vpop.permute.xlu0 %594
    %596 = vrot.lane.b32.xlu0 %v591, 118
    %v597 = vpop.permute.xlu0 %596
    %v600 = vmul.f32 %v550, %v595
    %v601 = vmul.f32 %v563, %v597
    %602 = vst.msk [vmem:[%s5] sm:$0xff] %vm441, %v345
    %603 = vst.msk [vmem:[%s5 + $0x8] sm:$0xff] %vm441, %v347
    %604 = vst.msk [vmem:[%s5 + $0x10] sm:$0xff] %vm441, %v349
    %605 = vst.msk [vmem:[%s5 + $0x18] sm:$0xff] %vm441, %v351
    %606 = vst.msk [vmem:[%s5 + $0x20] sm:$0xff] %vm441, %v353
    %607 = vst.msk [vmem:[%s5 + $0x28] sm:$0xff] %vm441, %v355
    %608 = vst.msk [vmem:[%s5 + $0x30] sm:$0xff] %vm441, %v357
    %609 = vst.msk [vmem:[%s5 + $0x38] sm:$0xff] %vm441, %v359
    %v612 = vrot.slane %v601, 7
    %vm613 = vcmask 1041409
    %v614 = vsel %vm613, %v612, %v600
    %vm616 = vcmask 74752
    %617 = vst.msk [vmem:[#allocation2] sm:$0x3] %vm616, %v614
    // Predicated region
    $region22: #{tpu_custom_call.1} parent=1 // pred_check
      _
    $region23: #{tpu_custom_call.1} parent=1 // pred_check_branch
      %619 = sbr.rel (0) target = $region25
    $region24: #{tpu_custom_call.1} parent=1 // pred_region
      _
    $region25: #{tpu_custom_call.1} parent=1 // pred_fallthru
      _
    // Predicated region
    $region26: #{tpu_custom_call.1} parent=1 // pred_check
      _
    $region27: #{tpu_custom_call.1} parent=1 // pred_check_branch
      %621 = sbr.rel (0) target = $region29
    $region28: #{tpu_custom_call.1} parent=1 // pred_region
      %s623 = ssub.s32 32, 32
      %624 = vsyncadd [#allocation3], %s623
      %s626 = sshll.u32 [#allocation2], 4
      %s627 = int_to_ptr.vmem [resolvable:$true] %s626
      %629 = dma.vmem_to_hbm [thread:$0]  %s627, 32, %s6, [#allocation3]
    $region29: #{tpu_custom_call.1} parent=1 // pred_fallthru
      _
    // Predicated region
    $region30: #{tpu_custom_call.1} parent=1 // pred_check
      _
    $region31: #{tpu_custom_call.1} parent=1 // pred_check_branch
      %631 = sbr.rel (0) target = $region33
    $region32: #{tpu_custom_call.1} parent=1 // pred_region
      _
    $region33: #{tpu_custom_call.1} parent=1 // pred_fallthru
      _
    // Predicated region
    $region34: #{tpu_custom_call.1} parent=1 // pred_check
      _
    $region35: #{tpu_custom_call.1} parent=1 // pred_check_branch
      %633 = sbr.rel (0) target = $region37
    $region36: #{tpu_custom_call.1} parent=1 // pred_region
      %634 = dma.done [#allocation3], 32
    $region37: #{tpu_custom_call.1} parent=1 // pred_fallthru
      _
    %635 = vsyncpa [#allocation3], 1

</llo_original>
